<compile_context>
chip_gen: v5e
topology: v5e:2x2
jax: 0.10.0
libtpu: 0.0.40
codegen_flags: <defaults>
</compile_context>

<pallas_src>
import jax
import jax.numpy as jnp
from jax.experimental import pallas as pl
from jax.experimental.pallas import tpu as pltpu


LANES = 128                      # TPU lane width
TR_MAX = 2048                    # sublane rows per tile (2 MiB in + 3 MiB out, f32)
SMALL_R = 8                      # r <= SMALL_R -> one full-extent block
FULL_BLOCK_MAX_N = 256 * 1024    # unaligned-N single-block budget (elems/compartment)
VMEM_LIMIT = 24 * 1024 * 1024    # explicit; usage ~10 MiB double-buffered, headroom left


def _ihd_kernel(coef_ref, y_ref, out_ref):
    # coef_ref: (4,) f32 in SMEM -> [c_I, nu, c_H, l]   (b already folded in)
    # y_ref:    (2, R, C) VMEM   -> row 0 = I, row 1 = H   (D never read)
    # out_ref:  (3, R, C) VMEM   -> rows dI, dH, dD
    c_i = coef_ref[0]            # b - g - nu
    nu = coef_ref[1]
    c_h = coef_ref[2]            # -(g + l)
    l = coef_ref[3]

    I = y_ref[0]
    # Per-row compute + store back-to-back: no stacked (3,R,C) temp, three
    # dense per-row stores, better vld/VALU/vst interleave (feedback #1).
    out_ref[0] = (c_i * I).astype(out_ref.dtype)
    H = y_ref[1]
    out_ref[1] = (nu * I + c_h * H).astype(out_ref.dtype)
    out_ref[2] = (l * H).astype(out_ref.dtype)


def _round_up(x, m):
    return ((x + m - 1) // m) * m


def _launch(coeffs, y3, tr, grid_len):
    _, r, c = y3.shape
    return pl.pallas_call(
        _ihd_kernel,
        out_shape=jax.ShapeDtypeStruct((3, r, c), y3.dtype),
        grid=(grid_len,),
        in_specs=[
            # 4 scalar coefficients, whole array resident in SMEM every step.
            pl.BlockSpec(memory_space=pltpu.MemorySpace.SMEM),
            # Only the I and H rows (leading-dim block 0 of size 2); D never DMA'd.
            pl.BlockSpec((2, tr, c), lambda i: (0, i, 0)),
        ],
        out_specs=pl.BlockSpec((3, tr, c), lambda i: (0, i, 0)),
        compiler_params=pltpu.CompilerParams(
            dimension_semantics=("parallel",),   # shards tiles across v7x's 2 TCs
            vmem_limit_bytes=VMEM_LIMIT,
        ),
    )(coeffs, y3)


def ihd_model_forward(parms, t, y_rows):
    """Forward pass of IHD_model.

    parms:  tuple (b1, b2, g, nu, l, time) of scalars (the nn.Parameters).
    t:      scalar time.
    y_rows: (3, N) state, rows = I, H, D (compartment-major; this is y.T of the
            PyTorch (N, 3) input, kept contiguous row-major upstream so the
            kernel-facing reshape is free — no transpose / extra HBM pass here).
    returns (3*N,) == torch.cat((dI, dH, dD), 0).
    """
    b1, b2, g, nu, l, time = parms

    # Scalar parameter algebra, folded outside the vector body.
    b = b1 + b2 * jax.nn.sigmoid(t - time)
    c_i = b - g - nu
    c_h = -(g + l)
    coeffs = jnp.stack([c_i, nu, c_h, l]).astype(jnp.float32)

    n = y_rows.shape[1]

    if n % LANES == 0:
        # Lane-aligned fast path: free reshape, no padding at all; Pallas
        # handles a partial last block along the row axis (feedback #2).
        r = n // LANES
        y3 = y_rows.reshape(3, r, LANES)
        if r <= SMALL_R:
            tr = r                                   # single full-extent block
        else:
            # >= 2 grid steps (v7x dual-TC sharding), tile capped at TR_MAX
            # rows to amortize per-step pipeline overhead (feedback #4/#5/#6).
            tr = min(TR_MAX, _round_up((r + 1) // 2, 8))
        out = _launch(coeffs, y3, tr, pl.cdiv(r, tr))
        return out.reshape(3 * n)

    if n <= FULL_BLOCK_MAX_N:
        # Unaligned N: one full-extent (·, 1, N) block, masked lane stores for
        # the ragged tail — no jnp.pad / slice HBM round trips (feedback #3).
        y3 = y_rows.reshape(3, 1, n)
        out = _launch(coeffs, y3, 1, 1)
        return out.reshape(3 * n)

    # TODO(synk): huge unaligned N falls back to a pad+slice round trip; keep
    # the state lane-padded (N % 128 == 0) end-to-end across ODE steps instead.
    n_pad = _round_up(n, LANES)
    y_pad = jnp.pad(y_rows, ((0, 0), (0, n_pad - n)))
    r = n_pad // LANES
    tr = min(TR_MAX, _round_up((r + 1) // 2, 8))
    out = _launch(coeffs, y_pad.reshape(3, r, LANES), tr, pl.cdiv(r, tr))
    return out.reshape(3, n_pad)[:, :n].reshape(3 * n)


def ihd_model_reference(parms, t, y_rows):
    """Plain-JAX reference of the PyTorch forward (y given compartment-major)."""
    b1, b2, g, nu, l, time = parms
    b = b1 + b2 * jax.nn.sigmoid(t - time)
    I, H = y_rows[0], y_rows[1]
    dI = b * I - g * I - nu * I
    dH = nu * I - g * H - l * H
    dD = l * H
    return jnp.concatenate((dI, dH, dD), axis=0)


if __name__ == "__main__":
    key = jax.random.PRNGKey(0)
    k1, k2, k3 = jax.random.split(key, 3)

    # Deterministic parameters: b1, b2, g, nu, l, time (the nn.Parameters).
    parms = (
        jnp.float32(0.25),   # b1
        jnp.float32(0.15),   # b2
        jnp.float32(0.10),   # g
        jnp.float32(0.05),   # nu
        jnp.float32(0.02),   # l
        jnp.float32(10.0),   # time
    )
    t = jnp.float32(12.0)

    fwd = jax.jit(ihd_model_forward)

    # Case 1: lane-aligned N with a non-divisible row count
    #         (r = 20 -> tr = 16, grid = 2, partial last block; no padding).
    N1 = 2560
    y1 = jax.random.uniform(k1, (3, N1), dtype=jnp.float32)
    out1 = jax.block_until_ready(fwd(parms, t, y1))
    ref1 = ihd_model_reference(parms, t, y1)
    assert out1.shape == (3 * N1,), out1.shape
    assert jnp.allclose(out1, ref1, atol=1e-6, rtol=1e-5)

    # Case 2: lane-aligned small N (single full-extent block, grid = 1).
    N2 = 1024
    y2 = jax.random.uniform(k2, (3, N2), dtype=jnp.float32)
    out2 = jax.block_until_ready(fwd(parms, t, y2))
    ref2 = ihd_model_reference(parms, t, y2)
    assert out2.shape == (3 * N2,), out2.shape
    assert jnp.allclose(out2, ref2, atol=1e-6, rtol=1e-5)

    # Case 3: unaligned N (single full-extent block, masked lane stores;
    #         no wrapper pad/slice).
    N3 = 300
    y3 = jax.random.uniform(k3, (3, N3), dtype=jnp.float32)
    out3 = jax.block_until_ready(fwd(parms, t, y3))
    ref3 = ihd_model_reference(parms, t, y3)
    assert out3.shape == (3 * N3,), out3.shape
    assert jnp.allclose(out3, ref3, atol=1e-6, rtol=1e-5)

    print("KERNEL_OK")
</pallas_src>

<mosaic_0001>
module attributes {stable_mosaic.version = 11 : i64} {
  func.func @_ihd_kernel(%arg0: i32, %arg1: memref<4xf32, #tpu.memory_space<smem>>, %arg2: memref<2x16x128xf32, #tpu.memory_space<vmem>>, %arg3: memref<3x16x128xf32, #tpu.memory_space<vmem>>) attributes {dimension_semantics = [#tpu.dimension_semantics<parallel>], iteration_bounds = array<i64: 2>, scalar_prefetch = 0 : i64, scratch_operands = 0 : i64, tpu.core_type = #tpu.core_type<tc>, window_params = [{transform_indices = @transform_0, window_bounds = array<i64: 4>}, {transform_indices = @transform_1, window_bounds = array<i64: 2, 16, 128>}, {transform_indices = @transform_2, window_bounds = array<i64: 3, 16, 128>}]} {
    %c0 = arith.constant 0 : index
    %0 = memref.load %arg1[%c0] : memref<4xf32, #tpu.memory_space<smem>>
    %c1 = arith.constant 1 : index
    %1 = memref.load %arg1[%c1] : memref<4xf32, #tpu.memory_space<smem>>
    %c2 = arith.constant 2 : index
    %2 = memref.load %arg1[%c2] : memref<4xf32, #tpu.memory_space<smem>>
    %c3 = arith.constant 3 : index
    %3 = memref.load %arg1[%c3] : memref<4xf32, #tpu.memory_space<smem>>
    %c0_0 = arith.constant 0 : index
    %c0_1 = arith.constant 0 : index
    %c0_2 = arith.constant 0 : index
    %4 = vector.load %arg2[%c0_0, %c0_1, %c0_2] : memref<2x16x128xf32, #tpu.memory_space<vmem>>, vector<1x16x128xf32>
    %5 = vector.shape_cast %4 : vector<1x16x128xf32> to vector<16x128xf32>
    %6 = vector.broadcast %0 : f32 to vector<16x128xf32>
    %7 = arith.mulf %6, %5 : vector<16x128xf32>
    %c0_3 = arith.constant 0 : index
    %c0_4 = arith.constant 0 : index
    %c0_5 = arith.constant 0 : index
    %8 = vector.load %arg3[%c0_3, %c0_4, %c0_5] : memref<3x16x128xf32, #tpu.memory_space<vmem>>, vector<1x16x128xf32>
    %9 = vector.shape_cast %8 : vector<1x16x128xf32> to vector<16x128xf32>
    %10 = vector.shape_cast %7 : vector<16x128xf32> to vector<1x16x128xf32>
    tpu.vector_store %arg3[%c0_3, %c0_4, %c0_5], %10 {strides = array<i32>} : memref<3x16x128xf32, #tpu.memory_space<vmem>>, vector<1x16x128xf32>,
    %c1_6 = arith.constant 1 : index
    %c0_7 = arith.constant 0 : index
    %c0_8 = arith.constant 0 : index
    %11 = vector.load %arg2[%c1_6, %c0_7, %c0_8] : memref<2x16x128xf32, #tpu.memory_space<vmem>>, vector<1x16x128xf32>
    %12 = vector.shape_cast %11 : vector<1x16x128xf32> to vector<16x128xf32>
    %13 = vector.broadcast %1 : f32 to vector<16x128xf32>
    %14 = arith.mulf %13, %5 : vector<16x128xf32>
    %15 = vector.broadcast %2 : f32 to vector<16x128xf32>
    %16 = arith.mulf %15, %12 : vector<16x128xf32>
    %17 = arith.addf %14, %16 : vector<16x128xf32>
    %c1_9 = arith.constant 1 : index
    %c0_10 = arith.constant 0 : index
    %c0_11 = arith.constant 0 : index
    %18 = vector.load %arg3[%c1_9, %c0_10, %c0_11] : memref<3x16x128xf32, #tpu.memory_space<vmem>>, vector<1x16x128xf32>
    %19 = vector.shape_cast %18 : vector<1x16x128xf32> to vector<16x128xf32>
    %20 = vector.shape_cast %17 : vector<16x128xf32> to vector<1x16x128xf32>
    tpu.vector_store %arg3[%c1_9, %c0_10, %c0_11], %20 {strides = array<i32>} : memref<3x16x128xf32, #tpu.memory_space<vmem>>, vector<1x16x128xf32>,
    %21 = vector.broadcast %3 : f32 to vector<16x128xf32>
    %22 = arith.mulf %21, %12 : vector<16x128xf32>
    %c2_12 = arith.constant 2 : index
    %c0_13 = arith.constant 0 : index
    %c0_14 = arith.constant 0 : index
    %23 = vector.load %arg3[%c2_12, %c0_13, %c0_14] : memref<3x16x128xf32, #tpu.memory_space<vmem>>, vector<1x16x128xf32>
    %24 = vector.shape_cast %23 : vector<1x16x128xf32> to vector<16x128xf32>
    %25 = vector.shape_cast %22 : vector<16x128xf32> to vector<1x16x128xf32>
    tpu.vector_store %arg3[%c2_12, %c0_13, %c0_14], %25 {strides = array<i32>} : memref<3x16x128xf32, #tpu.memory_space<vmem>>, vector<1x16x128xf32>,
    return
  }
  func.func @transform_0(%arg0: i32) -> i32 {
    %c0_i32 = arith.constant 0 : i32
    %c0_i32_0 = arith.constant 0 : i32
    return %c0_i32 : i32
  }
  func.func @transform_1(%arg0: i32) -> (i32, i32, i32) {
    %c0_i32 = arith.constant 0 : i32
    %c0_i32_0 = arith.constant 0 : i32
    %c0_i32_1 = arith.constant 0 : i32
    return %c0_i32, %arg0, %c0_i32_0 : i32, i32, i32
  }
  func.func @transform_2(%arg0: i32) -> (i32, i32, i32) {
    %c0_i32 = arith.constant 0 : i32
    %c0_i32_0 = arith.constant 0 : i32
    %c0_i32_1 = arith.constant 0 : i32
    return %c0_i32, %arg0, %c0_i32_0 : i32, i32, i32
  }
}

</mosaic_0001>

<llo_original>
// kernel: ihd_model_forward.1
$region0: #{ihd_model_forward.1}
  #allocation0 [shape = 'u32[]', space=smem, size = 0x4, offset = 0x4, fixed_abs, tag = 'smem constant byte address 0x4 - core index']
  #allocation1 [shape = 'u32[72,128]{1,0:T(1,128)}', space=vmem, size = 0x9000, scoped, tag = 'internal scratch']
  %s0 = inlined_call_operand.vmem [shape: f32[4], index: 0, kind: input, shape index: {}]
  %s1 = inlined_call_operand.vmem [shape: f32[3,20,128], index: 1, kind: input, shape index: {}]
  %s2 = inlined_call_operand.vmem [shape: f32[3,20,128], index: 2, kind: output, shape index: {}]
  %s3 = sld [smem:[#allocation0]]
  $region145: #{ihd_model_forward.1} parent=0
    _
  %s5 = ssub.s32 1, %s3
  %s6 = scalar_select 0, %s5, %s3
  $region1: #{ihd_model_forward.1} parent=0
    #allocation2 [shape = 'u8[512]{0}', space=smem, size = 0x200, scoped, tag = 'input window, operand 0, single buffered']
    #allocation3 [shape = 's32[2]{0}', space=sflag, size = 0x8, scoped, tag = 'scoped memory for ihd_model_forward.1']
    #allocation4 [shape = 'u8[32768]{0}', space=vmem, size = 0x8000, scoped, tag = 'input window, operand 1']
    #allocation5 [shape = 'u8[49152]{0}', space=vmem, size = 0xc000, scoped, tag = 'output window, operand 0']
    %7 = vsyncpa [#allocation3], 0
    loop: start=0, step=1, limit=4
    $region2: #{ihd_model_forward.1} parent=1 // loop_pre_header
      _
    $region3: #{ihd_model_forward.1} parent=1 // loop_header
      %s9 = sphi 0, %s13
      %p10 = scmp.ge.s32.totalorder %s9, 4
      %s17 = sphi 0, %s17
      %s19 = sphi 0, %s17
      %s20 = sphi 0, %s19
      %s34 = sphi 0, %s20
      %s40 = sphi 0, %s42
      %s43 = sphi 0, %s40
      %s44 = sphi 0, %s43
      %s60 = sphi 0, %s44
      %s66 = sphi 0, %s68
      %s69 = sphi 0, %s66
      %s70 = sphi 0, %s69
      %s86 = sphi 0, %s70
    $region4: #{ihd_model_forward.1} parent=1 // loop_header_branch
      %12 = sbr.rel (%p10) target = $region8
    $region5: #{ihd_model_forward.1} parent=1 // loop_body
      %s14 = ssub.s32 %s9, 1
      %s15 = ssub.s32 %s9, 2
      %s16 = sadd.s32 %s9, 1
      %s18 = sadd.s32 %s17, 1
      %p21 = scmp.eq.s32.totalorder %s9, 1
      %p22 = scmp.ne.s32.totalorder %s17, %s19
      %p23 = scmp.eq.s32.totalorder %s9, 0
      %p24 = por %p22, %p23
      %p25 = scmp.ne.s32.totalorder %s17, %s19
      %p26 = scmp.eq.s32.totalorder %s14, 1
      %p27 = por %p25, %p26
      %p28 = scmp.ne.s32.totalorder %s19, %s20
      %p29 = scmp.eq.s32.totalorder %s14, 0
      %p30 = por %p28, %p29
      %p31 = scmp.ne.s32.totalorder %s19, %s20
      %p32 = scmp.eq.s32.totalorder %s15, 1
      %p33 = por %p31, %p32
      %p35 = scmp.ne.s32.totalorder %s20, %s34
      %p36 = scmp.eq.s32.totalorder %s15, 0
      %p37 = por %p35, %p36
      %s38 = ssub.s32 %s9, %s16
      %p39 = scmp.eq.s32.totalorder %s38, 0
      %s41 = sadd.s32 %s40, 1
      %s42 = scalar_select %p39, %s40, %s41
      %p45 = pneg %p39
      %p46 = scmp.eq.s32.totalorder %s9, 1
      %p47 = por %p45, %p46
      %p48 = scmp.ne.s32.totalorder %s40, %s43
      %p49 = scmp.eq.s32.totalorder %s9, 0
      %p50 = por %p48, %p49
      %p51 = scmp.ne.s32.totalorder %s40, %s43
      %p52 = scmp.eq.s32.totalorder %s14, 1
      %p53 = por %p51, %p52
      %p54 = scmp.ne.s32.totalorder %s43, %s44
      %p55 = scmp.eq.s32.totalorder %s14, 0
      %p56 = por %p54, %p55
      %p57 = scmp.ne.s32.totalorder %s43, %s44
      %p58 = scmp.eq.s32.totalorder %s15, 1
      %p59 = por %p57, %p58
      %p61 = scmp.ne.s32.totalorder %s44, %s60
      %p62 = scmp.eq.s32.totalorder %s15, 0
      %p63 = por %p61, %p62
      %s64 = ssub.s32 %s9, %s16
      %p65 = scmp.eq.s32.totalorder %s64, 0
      %s67 = sadd.s32 %s66, 1
      %s68 = scalar_select %p65, %s66, %s67
      %p71 = pneg %p65
      %p72 = scmp.eq.s32.totalorder %s9, 1
      %p73 = por %p71, %p72
      %p74 = scmp.ne.s32.totalorder %s66, %s69
      %p75 = scmp.eq.s32.totalorder %s9, 0
      %p76 = por %p74, %p75
      %p77 = scmp.ne.s32.totalorder %s66, %s69
      %p78 = scmp.eq.s32.totalorder %s14, 1
      %p79 = por %p77, %p78
      %p80 = scmp.ne.s32.totalorder %s69, %s70
      %p81 = scmp.eq.s32.totalorder %s14, 0
      %p82 = por %p80, %p81
      %p83 = scmp.ne.s32.totalorder %s69, %s70
      %p84 = scmp.eq.s32.totalorder %s15, 1
      %p85 = por %p83, %p84
      %p87 = scmp.ne.s32.totalorder %s70, %s86
      %p88 = scmp.eq.s32.totalorder %s15, 0
      %p89 = por %p87, %p88
      %p90 = scmp.le.s32.totalorder 1, %s9
      %p91 = scmp.lt.s32.totalorder %s9, 3
      %p92 = pnand %p90, %p91
      %p93 = pneg %p92
      // Predicated region
      $region9: #{ihd_model_forward.1} parent=5 // pred_check
        _
      $region10: #{ihd_model_forward.1} parent=5 // pred_check_branch
        %95 = sbr.rel (%p92) target = $region12
      $region11: #{ihd_model_forward.1} parent=5 // pred_region
        %s96 = ssub.s32 %s9, 1
        // Predicated region
        $region13: #{ihd_model_forward.1} parent=11 // pred_check
          %p97 = pneg %p30
        $region14: #{ihd_model_forward.1} parent=11 // pred_check_branch
          %99 = sbr.rel (%p97) target = $region16
        $region15: #{ihd_model_forward.1} parent=11 // pred_region
          %101 = vsyncadd [#allocation3], 0
          %s103 = sshll.u32 %s0, 4
          %s104 = int_to_ptr.vmem [resolvable:$true] %s103
          %106 = dma.vmem_to_smem %s104, 16, [#allocation2], [#allocation3]
        $region16: #{ihd_model_forward.1} parent=11 // pred_fallthru
          _
      $region12: #{ihd_model_forward.1} parent=5 // pred_fallthru
        _
      %p107 = scmp.lt.s32.totalorder %s9, 2
      // Predicated region
      $region17: #{ihd_model_forward.1} parent=5 // pred_check
        %p108 = pneg %p107
      $region18: #{ihd_model_forward.1} parent=5 // pred_check_branch
        %110 = sbr.rel (%p108) target = $region20
      $region19: #{ihd_model_forward.1} parent=5 // pred_region
        // Predicated region
        $region21: #{ihd_model_forward.1} parent=19 // pred_check
          %p111 = pneg %p50
        $region22: #{ihd_model_forward.1} parent=19 // pred_check_branch
          %113 = sbr.rel (%p111) target = $region24
        $region23: #{ihd_model_forward.1} parent=19 // pred_region
          %s114 = sand.u32 %s40, 1
          %s115 = sand.u32 %s40, 1
          %s116 = smul.addr %s115, 32
          %s117 = scalar_lea.vmem [#allocation4], %s116
          %s118 = smul.u32 2, %s9
          %s119 = ssub.s32 3, %s118
          %p120 = scmp.lt.s32.totalorder %s119, 2
          %s121 = scalar_select %p120, %s119, 2
          %s122 = smul.u32 16, %s121
          %p123 = scmp.ne.s32.totalorder 0, %s122
          %s124 = smul.addr %s118, 8
          %s125 = scalar_lea.vmem %s1, %s124
          // Predicated region
          $region25: #{ihd_model_forward.1} parent=23 // pred_check
            %p126 = pneg %p123
          $region26: #{ihd_model_forward.1} parent=23 // pred_check_branch
            %128 = sbr.rel (%p126) target = $region28
          $region27: #{ihd_model_forward.1} parent=23 // pred_region
            // Predicated region
            $region29: #{ihd_model_forward.1} parent=27 // pred_check
              _
            $region30: #{ihd_model_forward.1} parent=27 // pred_check_branch
              %130 = sbr.rel (0) target = $region32
            $region31: #{ihd_model_forward.1} parent=27 // pred_region
              // Predicated region
              $region51: #{ihd_model_forward.1} parent=31 // pred_check
                _
              $region52: #{ihd_model_forward.1} parent=31 // pred_check_branch
                %188 = sbr.rel (0) target = $region54
              $region53: #{ihd_model_forward.1} parent=31 // pred_region
                %s189 = sshrl.u32 %s121, 1
                // While loop
                $region55: #{ihd_model_forward.1} parent=53 // loop_pre_header
                  _
                $region56: #{ihd_model_forward.1} parent=53 // loop_header
                  %s191 = sphi 0, %s193
                  %p192 = scmp.ge.s32.totalorder %s191, %s189
                  %s196 = sphi 0, %s209
                  %s197 = sphi %s125, %s212
                  %s198 = sphi %s117, %s213
                $region57: #{ihd_model_forward.1} parent=53 // loop_header_branch
                  %195 = sbr.rel (%p192) target = $region61
                $region58: #{ihd_model_forward.1} parent=53 // loop_body
                  %v199 = vld [vmem:[%s197] sm:$0xff]
                  %200 = vst [vmem:[%s198] sm:$0xff] %v199
                  %v201 = vld [vmem:[%s197 + $0x8] sm:$0xff]
                  %202 = vst [vmem:[%s198 + $0x8] sm:$0xff] %v201
                  %v203 = vld [vmem:[%s197 + $0x18] sm:$0xff]
                  %204 = vst [vmem:[%s198 + $0x10] sm:$0xff] %v203
                  %v205 = vld [vmem:[%s197 + $0x20] sm:$0xff]
                  %206 = vst [vmem:[%s198 + $0x18] sm:$0xff] %v205
                  %s207 = sadd.s32 1, %s196
                  %p208 = scmp.ge.s32.totalorder %s207, %s189
                  %s209 = scalar_select %p208, 0, %s207
                  %s210 = smul.u32 %s209, 16
                  %s211 = smul.u32 %s209, 16
                  %s212 = scalar_lea.vmem %s125, %s210
                  %s213 = scalar_lea.vmem %s117, %s211 [#allocation4]
                $region59: #{ihd_model_forward.1} parent=53 // loop_footer
                  %s193 = sadd.s32 %s191, 1
                $region60: #{ihd_model_forward.1} parent=53 // loop_footer_branch
                  %190 = sbr.rel target = $region56
                $region61: #{ihd_model_forward.1} parent=53 // loop_exit
                  _
                %s214 = sshrl.u32 %s121, 1
                %s215 = sand.u32 %s121, 1
                %s216 = smul.u32 %s214, 2
                %s217 = smul.u32 8, %s216
                %s218 = scalar_lea.vmem %s125, %s217
                %s219 = smul.u32 8, %s216
                %s220 = scalar_lea.vmem %s117, %s219 [#allocation4]
                // While loop
                $region62: #{ihd_model_forward.1} parent=53 // loop_pre_header
                  _
                $region63: #{ihd_model_forward.1} parent=53 // loop_header
                  %s222 = sphi 0, %s224
                  %p223 = scmp.ge.s32.totalorder %s222, %s215
                  %s227 = sphi 0, %s236
                  %s228 = sphi %s218, %s239
                  %s229 = sphi %s220, %s240
                $region64: #{ihd_model_forward.1} parent=53 // loop_header_branch
                  %226 = sbr.rel (%p223) target = $region68
                $region65: #{ihd_model_forward.1} parent=53 // loop_body
                  %v230 = vld [vmem:[%s228] sm:$0xff]
                  %231 = vst [vmem:[%s229] sm:$0xff] %v230
                  %v232 = vld [vmem:[%s228 + $0x18] sm:$0xff]
                  %233 = vst [vmem:[%s229 + $0x10] sm:$0xff] %v232
                  %s234 = sadd.s32 1, %s227
                  %p235 = scmp.ge.s32.totalorder %s234, %s215
                  %s236 = scalar_select %p235, 0, %s234
                  %s237 = smul.u32 %s236, 8
                  %s238 = smul.u32 %s236, 8
                  %s239 = scalar_lea.vmem %s218, %s237
                  %s240 = scalar_lea.vmem %s220, %s238 [#allocation4]
                $region66: #{ihd_model_forward.1} parent=53 // loop_footer
                  %s224 = sadd.s32 %s222, 1
                $region67: #{ihd_model_forward.1} parent=53 // loop_footer_branch
                  %221 = sbr.rel target = $region63
                $region68: #{ihd_model_forward.1} parent=53 // loop_exit
                  _
              $region54: #{ihd_model_forward.1} parent=31 // pred_fallthru
                _
              // Predicated region
              $region69: #{ihd_model_forward.1} parent=31 // pred_check
                _
              $region70: #{ihd_model_forward.1} parent=31 // pred_check_branch
                %242 = sbr.rel target = $region72
              $region71: #{ihd_model_forward.1} parent=31 // pred_region
                _
              $region72: #{ihd_model_forward.1} parent=31 // pred_fallthru
                _
            $region32: #{ihd_model_forward.1} parent=27 // pred_fallthru
              _
            // Predicated region
            $region33: #{ihd_model_forward.1} parent=27 // pred_check
              _
            $region34: #{ihd_model_forward.1} parent=27 // pred_check_branch
              %132 = sbr.rel target = $region36
            $region35: #{ihd_model_forward.1} parent=27 // pred_region
              %s134 = ssub.s32 256, 1
              %s135 = sshrl.u32 %s121, 1
              // While loop
              $region37: #{ihd_model_forward.1} parent=35 // loop_pre_header
                _
              $region38: #{ihd_model_forward.1} parent=35 // loop_header
                %s137 = sphi 0, %s139
                %p138 = scmp.ge.s32.totalorder %s137, %s135
                %s142 = sphi 0, %s155
                %s143 = sphi %s125, %s158
                %s144 = sphi %s117, %s159
              $region39: #{ihd_model_forward.1} parent=35 // loop_header_branch
                %141 = sbr.rel (%p138) target = $region43
              $region40: #{ihd_model_forward.1} parent=35 // loop_body
                %v145 = vld [vmem:[%s143] sm:%s134]
                %146 = vst [vmem:[%s144] sm:%s134] %v145
                %v147 = vld [vmem:[%s143 + $0x8] sm:%s134]
                %148 = vst [vmem:[%s144 + $0x8] sm:%s134] %v147
                %v149 = vld [vmem:[%s143 + $0x18] sm:%s134]
                %150 = vst [vmem:[%s144 + $0x10] sm:%s134] %v149
                %v151 = vld [vmem:[%s143 + $0x20] sm:%s134]
                %152 = vst [vmem:[%s144 + $0x18] sm:%s134] %v151
                %s153 = sadd.s32 1, %s142
                %p154 = scmp.ge.s32.totalorder %s153, %s135
                %s155 = scalar_select %p154, 0, %s153
                %s156 = smul.u32 %s155, 16
                %s157 = smul.u32 %s155, 16
                %s158 = scalar_lea.vmem %s125, %s156
                %s159 = scalar_lea.vmem %s117, %s157 [#allocation4]
              $region41: #{ihd_model_forward.1} parent=35 // loop_footer
                %s139 = sadd.s32 %s137, 1
              $region42: #{ihd_model_forward.1} parent=35 // loop_footer_branch
                %136 = sbr.rel target = $region38
              $region43: #{ihd_model_forward.1} parent=35 // loop_exit
                _
              %s160 = sshrl.u32 %s121, 1
              %s161 = sand.u32 %s121, 1
              %s162 = smul.u32 %s160, 2
              %s163 = smul.u32 8, %s162
              %s164 = scalar_lea.vmem %s125, %s163
              %s165 = smul.u32 8, %s162
              %s166 = scalar_lea.vmem %s117, %s165 [#allocation4]
              // While loop
              $region44: #{ihd_model_forward.1} parent=35 // loop_pre_header
                _
              $region45: #{ihd_model_forward.1} parent=35 // loop_header
                %s168 = sphi 0, %s170
                %p169 = scmp.ge.s32.totalorder %s168, %s161
                %s173 = sphi 0, %s182
                %s174 = sphi %s164, %s185
                %s175 = sphi %s166, %s186
              $region46: #{ihd_model_forward.1} parent=35 // loop_header_branch
                %172 = sbr.rel (%p169) target = $region50
              $region47: #{ihd_model_forward.1} parent=35 // loop_body
                %v176 = vld [vmem:[%s174] sm:%s134]
                %177 = vst [vmem:[%s175] sm:%s134] %v176
                %v178 = vld [vmem:[%s174 + $0x18] sm:%s134]
                %179 = vst [vmem:[%s175 + $0x10] sm:%s134] %v178
                %s180 = sadd.s32 1, %s173
                %p181 = scmp.ge.s32.totalorder %s180, %s161
                %s182 = scalar_select %p181, 0, %s180
                %s183 = smul.u32 %s182, 8
                %s184 = smul.u32 %s182, 8
                %s185 = scalar_lea.vmem %s164, %s183
                %s186 = scalar_lea.vmem %s166, %s184 [#allocation4]
              $region48: #{ihd_model_forward.1} parent=35 // loop_footer
                %s170 = sadd.s32 %s168, 1
              $region49: #{ihd_model_forward.1} parent=35 // loop_footer_branch
                %167 = sbr.rel target = $region45
              $region50: #{ihd_model_forward.1} parent=35 // loop_exit
                _
            $region36: #{ihd_model_forward.1} parent=27 // pred_fallthru
              _
          $region28: #{ihd_model_forward.1} parent=23 // pred_fallthru
            _
          %243 = vnop
        $region24: #{ihd_model_forward.1} parent=19 // pred_fallthru
          _
      $region20: #{ihd_model_forward.1} parent=5 // pred_fallthru
        _
      %p244 = scmp.le.s32.totalorder 1, %s9
      %p245 = scmp.lt.s32.totalorder %s9, 3
      %p246 = pnand %p244, %p245
      %p247 = pneg %p246
      // Predicated region
      $region73: #{ihd_model_forward.1} parent=5 // pred_check
        _
      $region74: #{ihd_model_forward.1} parent=5 // pred_check_branch
        %249 = sbr.rel (%p246) target = $region76
      $region75: #{ihd_model_forward.1} parent=5 // pred_region
        %s250 = ssub.s32 %s9, 1
        // Predicated region
        $region77: #{ihd_model_forward.1} parent=75 // pred_check
          %p251 = pneg %p30
        $region78: #{ihd_model_forward.1} parent=75 // pred_check_branch
          %253 = sbr.rel (%p251) target = $region80
        $region79: #{ihd_model_forward.1} parent=75 // pred_region
          %255 = dma.done [#allocation3], 16
        $region80: #{ihd_model_forward.1} parent=75 // pred_fallthru
          _
        %s256 = sand.u32 %s43, 1
        %s257 = sand.u32 %s43, 1
        %s258 = smul.addr %s257, 32
        %s259 = scalar_lea.vmem [#allocation4], %s258
        // Predicated region
        $region81: #{ihd_model_forward.1} parent=75 // pred_check
          %p260 = pneg %p56
        $region82: #{ihd_model_forward.1} parent=75 // pred_check_branch
          %262 = sbr.rel (%p260) target = $region84
        $region83: #{ihd_model_forward.1} parent=75 // pred_region
          _
        $region84: #{ihd_model_forward.1} parent=75 // pred_fallthru
          _
        %263 = sfence
        %p264 = pneg %p30
        %p265 = pneg %p27
        %s266 = sand.u32 %s43, 1
        %s267 = sand.u32 %s43, 1
        %s268 = smul.addr %s267, 32
        %s269 = scalar_lea.vmem [#allocation4], %s268
        %p270 = pneg %p56
        %p271 = pneg %p53
        %p272 = pneg %p82
        %p273 = pneg %p79
        %s274 = sand.u32 %s69, 1
        %s275 = sand.u32 %s69, 1
        %s276 = smul.addr %s275, 48
        %s277 = scalar_lea.vmem [#allocation5], %s276
        %s278 = smul.u32 2, %s14
        %s279 = ssub.s32 3, %s278
        %p280 = scmp.lt.s32.totalorder %s279, 2
        %s281 = scalar_select %p280, %s279, 2
        %s282 = smul.u32 16, %s281
        %s283 = smul.u32 2, %s14
        %s284 = ssub.s32 3, %s283
        %p285 = scmp.lt.s32.totalorder %s284, 2
        %s286 = scalar_select %p285, %s284, 2
        %s287 = smul.u32 24, %s286
        %s288 = sld [smem:[#allocation2]]
        %s289 = sld [smem:[#allocation2 + $0x1]]
        %s290 = sld [smem:[#allocation2 + $0x2]]
        %s291 = sld [smem:[#allocation2 + $0x3]]
        %v292 = vld [vmem:[%s259] sm:$0xff]
        %v293 = vld [vmem:[%s259 + $0x8] sm:$0xff]
        %v294 = vstv %s288
        %v295 = vmul.f32 %v294, %v292
        %v296 = vmul.f32 %v294, %v293
        %297 = vst [vmem:[%s277] sm:$0xff] %v295
        %298 = vst [vmem:[%s277 + $0x8] sm:$0xff] %v296
        %s299 = scalar_lea.vmem %s259, 16 [#allocation4]
        %v300 = vld [vmem:[%s299] sm:$0xff]
        %v301 = vld [vmem:[%s299 + $0x8] sm:$0xff]
        %v302 = vstv %s289
        %v303 = vmul.f32 %v302, %v292
        %v304 = vmul.f32 %v302, %v293
        %v305 = vstv %s290
        %v306 = vmul.f32 %v305, %v300
        %v307 = vmul.f32 %v305, %v301
        %v308 = vadd.f32 %v303, %v306
        %v309 = vadd.f32 %v304, %v307
        %s310 = scalar_lea.vmem %s277, 16 [#allocation5]
        %311 = vst [vmem:[%s310] sm:$0xff] %v308
        %312 = vst [vmem:[%s310 + $0x8] sm:$0xff] %v309
        %v313 = vstv %s291
        %v314 = vmul.f32 %v313, %v300
        %v315 = vmul.f32 %v313, %v301
        %s316 = scalar_lea.vmem %s277, 32 [#allocation5]
        %317 = vst [vmem:[%s316] sm:$0xff] %v314
        %318 = vst [vmem:[%s316 + $0x8] sm:$0xff] %v315
        %s319 = sand.u32 %s69, 1
        %s320 = sand.u32 %s69, 1
        %s321 = smul.addr %s320, 48
        %s322 = scalar_lea.vmem [#allocation5], %s321
        // Predicated region
        $region85: #{ihd_model_forward.1} parent=75 // pred_check
          %p323 = pneg %p79
        $region86: #{ihd_model_forward.1} parent=75 // pred_check_branch
          %325 = sbr.rel (%p323) target = $region88
        $region87: #{ihd_model_forward.1} parent=75 // pred_region
          %s326 = smul.u32 2, %s14
          %s327 = ssub.s32 3, %s326
          %p328 = scmp.lt.s32.totalorder %s327, 2
          %s329 = scalar_select %p328, %s327, 2
          %s330 = smul.u32 24, %s329
          %p331 = scmp.ne.s32.totalorder 0, %s330
          %s332 = smul.addr %s326, 8
          %s333 = scalar_lea.vmem %s2, %s332
          // Predicated region
          $region89: #{ihd_model_forward.1} parent=87 // pred_check
            %p334 = pneg %p331
          $region90: #{ihd_model_forward.1} parent=87 // pred_check_branch
            %336 = sbr.rel (%p334) target = $region92
          $region91: #{ihd_model_forward.1} parent=87 // pred_region
            // Predicated region
            $region93: #{ihd_model_forward.1} parent=91 // pred_check
              _
            $region94: #{ihd_model_forward.1} parent=91 // pred_check_branch
              %338 = sbr.rel (0) target = $region96
            $region95: #{ihd_model_forward.1} parent=91 // pred_region
              // Predicated region
              $region115: #{ihd_model_forward.1} parent=95 // pred_check
                _
              $region116: #{ihd_model_forward.1} parent=95 // pred_check_branch
                %402 = sbr.rel (0) target = $region118
              $region117: #{ihd_model_forward.1} parent=95 // pred_region
                %s403 = sshrl.u32 %s329, 1
                // While loop
                $region119: #{ihd_model_forward.1} parent=117 // loop_pre_header
                  _
                $region120: #{ihd_model_forward.1} parent=117 // loop_header
                  %s405 = sphi 0, %s407
                  %p406 = scmp.ge.s32.totalorder %s405, %s403
                  %s410 = sphi 0, %s427
                  %s411 = sphi %s322, %s430
                  %s412 = sphi %s333, %s431
                $region121: #{ihd_model_forward.1} parent=117 // loop_header_branch
                  %409 = sbr.rel (%p406) target = $region125
                $region122: #{ihd_model_forward.1} parent=117 // loop_body
                  %v413 = vld [vmem:[%s411] sm:$0xff]
                  %414 = vst [vmem:[%s412] sm:$0xff] %v413
                  %v415 = vld [vmem:[%s411 + $0x8] sm:$0xff]
                  %416 = vst [vmem:[%s412 + $0x8] sm:$0xff] %v415
                  %v417 = vld [vmem:[%s411 + $0x10] sm:$0xff]
                  %418 = vst [vmem:[%s412 + $0x18] sm:$0xff] %v417
                  %v419 = vld [vmem:[%s411 + $0x18] sm:$0xff]
                  %420 = vst [vmem:[%s412 + $0x20] sm:$0xff] %v419
                  %v421 = vld [vmem:[%s411 + $0x20] sm:$0xff]
                  %422 = vst [vmem:[%s412 + $0x30] sm:$0xff] %v421
                  %v423 = vld [vmem:[%s411 + $0x28] sm:$0xff]
                  %424 = vst [vmem:[%s412 + $0x38] sm:$0xff] %v423
                  %s425 = sadd.s32 1, %s410
                  %p426 = scmp.ge.s32.totalorder %s425, %s403
                  %s427 = scalar_select %p426, 0, %s425
                  %s428 = smul.u32 %s427, 16
                  %s429 = smul.u32 %s427, 16
                  %s430 = scalar_lea.vmem %s322, %s428 [#allocation5]
                  %s431 = scalar_lea.vmem %s333, %s429
                $region123: #{ihd_model_forward.1} parent=117 // loop_footer
                  %s407 = sadd.s32 %s405, 1
                $region124: #{ihd_model_forward.1} parent=117 // loop_footer_branch
                  %404 = sbr.rel target = $region120
                $region125: #{ihd_model_forward.1} parent=117 // loop_exit
                  _
                %s432 = sshrl.u32 %s329, 1
                %s433 = sand.u32 %s329, 1
                %s434 = smul.u32 %s432, 2
                %s435 = smul.u32 8, %s434
                %s436 = scalar_lea.vmem %s322, %s435 [#allocation5]
                %s437 = smul.u32 8, %s434
                %s438 = scalar_lea.vmem %s333, %s437
                // While loop
                $region126: #{ihd_model_forward.1} parent=117 // loop_pre_header
                  _
                $region127: #{ihd_model_forward.1} parent=117 // loop_header
                  %s440 = sphi 0, %s442
                  %p441 = scmp.ge.s32.totalorder %s440, %s433
                  %s445 = sphi 0, %s456
                  %s446 = sphi %s436, %s459
                  %s447 = sphi %s438, %s460
                $region128: #{ihd_model_forward.1} parent=117 // loop_header_branch
                  %444 = sbr.rel (%p441) target = $region132
                $region129: #{ihd_model_forward.1} parent=117 // loop_body
                  %v448 = vld [vmem:[%s446] sm:$0xff]
                  %449 = vst [vmem:[%s447] sm:$0xff] %v448
                  %v450 = vld [vmem:[%s446 + $0x10] sm:$0xff]
                  %451 = vst [vmem:[%s447 + $0x18] sm:$0xff] %v450
                  %v452 = vld [vmem:[%s446 + $0x20] sm:$0xff]
                  %453 = vst [vmem:[%s447 + $0x30] sm:$0xff] %v452
                  %s454 = sadd.s32 1, %s445
                  %p455 = scmp.ge.s32.totalorder %s454, %s433
                  %s456 = scalar_select %p455, 0, %s454
                  %s457 = smul.u32 %s456, 8
                  %s458 = smul.u32 %s456, 8
                  %s459 = scalar_lea.vmem %s436, %s457 [#allocation5]
                  %s460 = scalar_lea.vmem %s438, %s458
                $region130: #{ihd_model_forward.1} parent=117 // loop_footer
                  %s442 = sadd.s32 %s440, 1
                $region131: #{ihd_model_forward.1} parent=117 // loop_footer_branch
                  %439 = sbr.rel target = $region127
                $region132: #{ihd_model_forward.1} parent=117 // loop_exit
                  _
              $region118: #{ihd_model_forward.1} parent=95 // pred_fallthru
                _
              // Predicated region
              $region133: #{ihd_model_forward.1} parent=95 // pred_check
                _
              $region134: #{ihd_model_forward.1} parent=95 // pred_check_branch
                %462 = sbr.rel target = $region136
              $region135: #{ihd_model_forward.1} parent=95 // pred_region
                _
              $region136: #{ihd_model_forward.1} parent=95 // pred_fallthru
                _
            $region96: #{ihd_model_forward.1} parent=91 // pred_fallthru
              _
            // Predicated region
            $region97: #{ihd_model_forward.1} parent=91 // pred_check
              _
            $region98: #{ihd_model_forward.1} parent=91 // pred_check_branch
              %340 = sbr.rel target = $region100
            $region99: #{ihd_model_forward.1} parent=91 // pred_region
              %s342 = ssub.s32 256, 1
              %s343 = sshrl.u32 %s329, 1
              // While loop
              $region101: #{ihd_model_forward.1} parent=99 // loop_pre_header
                _
              $region102: #{ihd_model_forward.1} parent=99 // loop_header
                %s345 = sphi 0, %s347
                %p346 = scmp.ge.s32.totalorder %s345, %s343
                %s350 = sphi 0, %s367
                %s351 = sphi %s322, %s370
                %s352 = sphi %s333, %s371
              $region103: #{ihd_model_forward.1} parent=99 // loop_header_branch
                %349 = sbr.rel (%p346) target = $region107
              $region104: #{ihd_model_forward.1} parent=99 // loop_body
                %v353 = vld [vmem:[%s351] sm:%s342]
                %354 = vst [vmem:[%s352] sm:%s342] %v353
                %v355 = vld [vmem:[%s351 + $0x8] sm:%s342]
                %356 = vst [vmem:[%s352 + $0x8] sm:%s342] %v355
                %v357 = vld [vmem:[%s351 + $0x10] sm:%s342]
                %358 = vst [vmem:[%s352 + $0x18] sm:%s342] %v357
                %v359 = vld [vmem:[%s351 + $0x18] sm:%s342]
                %360 = vst [vmem:[%s352 + $0x20] sm:%s342] %v359
                %v361 = vld [vmem:[%s351 + $0x20] sm:%s342]
                %362 = vst [vmem:[%s352 + $0x30] sm:%s342] %v361
                %v363 = vld [vmem:[%s351 + $0x28] sm:%s342]
                %364 = vst [vmem:[%s352 + $0x38] sm:%s342] %v363
                %s365 = sadd.s32 1, %s350
                %p366 = scmp.ge.s32.totalorder %s365, %s343
                %s367 = scalar_select %p366, 0, %s365
                %s368 = smul.u32 %s367, 16
                %s369 = smul.u32 %s367, 16
                %s370 = scalar_lea.vmem %s322, %s368 [#allocation5]
                %s371 = scalar_lea.vmem %s333, %s369
              $region105: #{ihd_model_forward.1} parent=99 // loop_footer
                %s347 = sadd.s32 %s345, 1
              $region106: #{ihd_model_forward.1} parent=99 // loop_footer_branch
                %344 = sbr.rel target = $region102
              $region107: #{ihd_model_forward.1} parent=99 // loop_exit
                _
              %s372 = sshrl.u32 %s329, 1
              %s373 = sand.u32 %s329, 1
              %s374 = smul.u32 %s372, 2
              %s375 = smul.u32 8, %s374
              %s376 = scalar_lea.vmem %s322, %s375 [#allocation5]
              %s377 = smul.u32 8, %s374
              %s378 = scalar_lea.vmem %s333, %s377
              // While loop
              $region108: #{ihd_model_forward.1} parent=99 // loop_pre_header
                _
              $region109: #{ihd_model_forward.1} parent=99 // loop_header
                %s380 = sphi 0, %s382
                %p381 = scmp.ge.s32.totalorder %s380, %s373
                %s385 = sphi 0, %s396
                %s386 = sphi %s376, %s399
                %s387 = sphi %s378, %s400
              $region110: #{ihd_model_forward.1} parent=99 // loop_header_branch
                %384 = sbr.rel (%p381) target = $region114
              $region111: #{ihd_model_forward.1} parent=99 // loop_body
                %v388 = vld [vmem:[%s386] sm:%s342]
                %389 = vst [vmem:[%s387] sm:%s342] %v388
                %v390 = vld [vmem:[%s386 + $0x10] sm:%s342]
                %391 = vst [vmem:[%s387 + $0x18] sm:%s342] %v390
                %v392 = vld [vmem:[%s386 + $0x20] sm:%s342]
                %393 = vst [vmem:[%s387 + $0x30] sm:%s342] %v392
                %s394 = sadd.s32 1, %s385
                %p395 = scmp.ge.s32.totalorder %s394, %s373
                %s396 = scalar_select %p395, 0, %s394
                %s397 = smul.u32 %s396, 8
                %s398 = smul.u32 %s396, 8
                %s399 = scalar_lea.vmem %s376, %s397 [#allocation5]
                %s400 = scalar_lea.vmem %s378, %s398
              $region112: #{ihd_model_forward.1} parent=99 // loop_footer
                %s382 = sadd.s32 %s380, 1
              $region113: #{ihd_model_forward.1} parent=99 // loop_footer_branch
                %379 = sbr.rel target = $region109
              $region114: #{ihd_model_forward.1} parent=99 // loop_exit
                _
            $region100: #{ihd_model_forward.1} parent=91 // pred_fallthru
              _
          $region92: #{ihd_model_forward.1} parent=87 // pred_fallthru
            _
          %463 = vnop
        $region88: #{ihd_model_forward.1} parent=75 // pred_fallthru
          _
      $region76: #{ihd_model_forward.1} parent=5 // pred_fallthru
        _
      %p464 = scmp.le.s32.totalorder 2, %s9
      // Predicated region
      $region137: #{ihd_model_forward.1} parent=5 // pred_check
        %p465 = pneg %p464
      $region138: #{ihd_model_forward.1} parent=5 // pred_check_branch
        %467 = sbr.rel (%p465) target = $region140
      $region139: #{ihd_model_forward.1} parent=5 // pred_region
        %s468 = ssub.s32 %s9, 2
        // Predicated region
        $region141: #{ihd_model_forward.1} parent=139 // pred_check
          %p469 = pneg %p85
        $region142: #{ihd_model_forward.1} parent=139 // pred_check_branch
          %471 = sbr.rel (%p469) target = $region144
        $region143: #{ihd_model_forward.1} parent=139 // pred_region
          %s472 = sand.u32 %s70, 1
          %s473 = sand.u32 %s70, 1
          %s474 = smul.addr %s473, 48
          %s475 = scalar_lea.vmem [#allocation5], %s474
        $region144: #{ihd_model_forward.1} parent=139 // pred_fallthru
          _
      $region140: #{ihd_model_forward.1} parent=5 // pred_fallthru
        _
    $region6: #{ihd_model_forward.1} parent=1 // loop_footer
      %s13 = sadd.s32 1, %s9
    $region7: #{ihd_model_forward.1} parent=1 // loop_footer_branch
      %8 = sbr.rel target = $region3
    $region8: #{ihd_model_forward.1} parent=1 // loop_exit
      _
    %476 = vsyncpa [#allocation3], 1
    %s477 = scalar_lea.sflag [#allocation3], 1
    %478 = vsyncpa %s477, 1

</llo_original>
